<compile_context>
chip_gen: v7x
topology: tpu7x:2x2x1
jax: 0.10.0
libtpu: 0.0.40
codegen_flags: <defaults>
</compile_context>

<pallas_src>
import jax
import jax.numpy as jnp
from jax.experimental import pallas as pl
from jax.experimental.pallas import tpu as pltpu


def _batchnorm(x, eps=1e-5):
    # BatchNorm1d in training mode, default affine params (gamma=1, beta=0):
    # normalize with biased batch variance.  Always float32.
    mu = jnp.mean(x, axis=0, keepdims=True)
    var = jnp.mean((x - mu) ** 2, axis=0, keepdims=True)
    return (x - mu) * jax.lax.rsqrt(var + eps)


def critic3_kernel(state_ref, action_ref,
                   w1_ref,       # (S,  F1) bf16   fc1 (no bias)
                   wm_x_ref,     # (F1, F2) bf16   fc_merged, state half
                   wm_a_ref,     # (A,  F2) bf16   fc_merged, action half
                   w2_ref,       # (F2, F3) bf16   fc2
                   small_ref,    # (4,  F)  f32    rows: [bm; b2; w3; b3_bcast]
                   out_ref):     # (B,  1)  f32
    s = state_ref[...]                                   # f32
    a = action_ref[...].astype(jnp.bfloat16)             # bf16 MXU operand

    bm = small_ref[0:1, :]        # (1, F2)
    b2 = small_ref[1:2, :]        # (1, F3)
    w3 = small_ref[2:3, :]        # (1, F3)  fc3 weight as a lane-dense row
    b3 = small_ref[3:4, :]        # (1, F3)  fc3 bias broadcast across lanes

    # bn0 (f32) -> fc1 (bf16 MXU, f32 accumulate) -> relu
    x = _batchnorm(s).astype(jnp.bfloat16)
    x = jnp.maximum(
        jnp.dot(x, w1_ref[...], preferred_element_type=jnp.float32), 0.0)

    # cat([x, action]) @ Wm.T + bm  ==  x @ Wm_x + a @ Wm_a + bm ; relu
    x = x.astype(jnp.bfloat16)
    h = (jnp.dot(x, wm_x_ref[...], preferred_element_type=jnp.float32)
         + jnp.dot(a, wm_a_ref[...], preferred_element_type=jnp.float32)
         + bm)
    h = jnp.maximum(h, 0.0)

    # bn1 (f32) -> fc2 (bf16 MXU) -> relu
    h = _batchnorm(h)
    h = jnp.maximum(
        jnp.dot(h.astype(jnp.bfloat16), w2_ref[...],
                preferred_element_type=jnp.float32) + b2, 0.0)

    # bn2 (f32) -> fc3: (B,F3)x(F3,1) is a lane-sparse MXU job; do it as a
    # VPU multiply + row-reduce instead (free XLU slot), then add the bias.
    h = _batchnorm(h)
    out_ref[...] = jnp.sum(h * w3, axis=-1, keepdims=True) + b3[:, :1]


@jax.jit
def critic3_forward(state, action, params):
    B = state.shape[0]
    vmem = pl.BlockSpec(memory_space=pltpu.MemorySpace.VMEM)
    args = (state, action,
            params["w1"], params["wm_x"], params["wm_a"], params["w2"],
            params["small"])
    return pl.pallas_call(
        critic3_kernel,
        out_shape=jax.ShapeDtypeStruct((B, 1), jnp.float32),
        in_specs=[vmem] * len(args),
        out_specs=vmem,
    )(*args)


def init_params(key, state_size, action_size, fc1_units, fc2_units, fc3_units):
    """Deterministic init mirroring Critic3.reset_parameters (synthetic)."""
    # The module sets fc3_units = params['CRITIC_FC2'], i.e. F3 == F2; the
    # packed small-vector buffer relies on that.
    assert fc2_units == fc3_units, "Critic3 requires fc3_units == fc2_units"
    ks = jax.random.split(key, 8)

    def unif(k, shape, bound):
        return jax.random.uniform(k, shape, jnp.float32, -bound, bound)

    # fc1: Linear(state_size, fc1_units, bias=False); U(+-1/sqrt(S))
    w1 = unif(ks[0], (fc1_units, state_size), 1.0 / jnp.sqrt(state_size))

    # fc_merged: Linear(fc1+A, fc2); weight & bias U(+-1/sqrt(fan_in))
    fan_m = fc1_units + action_size
    wm = unif(ks[1], (fc2_units, fan_m), 1.0 / jnp.sqrt(fan_m))
    bm = unif(ks[2], (1, fc2_units), 1.0 / jnp.sqrt(fan_m))

    # fc2: Linear(fc2, fc3)
    w2 = unif(ks[3], (fc3_units, fc2_units), 1.0 / jnp.sqrt(fc2_units))
    b2 = unif(ks[4], (1, fc3_units), 1.0 / jnp.sqrt(fc2_units))

    # fc3: Linear(fc3, 1); weight U(-0.003, 0.003), bias default U(+-1/sqrt(fc3))
    w3 = unif(ks[5], (1, fc3_units), 0.003)
    b3 = unif(ks[6], (1, 1), 1.0 / jnp.sqrt(fc3_units))

    # Pack the four tiny (1,F) vectors into one contiguous f32 buffer
    # (fewer DMA descriptors per call).  Row 3 carries b3 broadcast across F.
    small = jnp.concatenate(
        [bm, b2, w3, jnp.broadcast_to(b3, (1, fc3_units))], axis=0)  # (4, F)

    return {
        # pre-transposed to (in, out) and cast to bf16 for the MXU
        "w1":   jnp.transpose(w1).astype(jnp.bfloat16),              # (S,  F1)
        "wm_x": jnp.transpose(wm[:, :fc1_units]).astype(jnp.bfloat16),  # (F1, F2)
        "wm_a": jnp.transpose(wm[:, fc1_units:]).astype(jnp.bfloat16),  # (A,  F2)
        "w2":   jnp.transpose(w2).astype(jnp.bfloat16),              # (F2, F3)
        "small": small,                                              # (4,  F) f32
    }


def critic3_reference(state, action, p):
    """Pure-JAX reference mirroring the kernel's mixed precision exactly."""
    bm = p["small"][0:1, :]
    b2 = p["small"][1:2, :]
    w3 = p["small"][2:3, :]
    b3 = p["small"][3:4, 0:1]

    x = _batchnorm(state).astype(jnp.bfloat16)
    x = jnp.maximum(jnp.dot(x, p["w1"], preferred_element_type=jnp.float32), 0.0)
    a = action.astype(jnp.bfloat16)
    h = (jnp.dot(x.astype(jnp.bfloat16), p["wm_x"],
                 preferred_element_type=jnp.float32)
         + jnp.dot(a, p["wm_a"], preferred_element_type=jnp.float32) + bm)
    h = jnp.maximum(h, 0.0)
    h = _batchnorm(h)
    h = jnp.maximum(jnp.dot(h.astype(jnp.bfloat16), p["w2"],
                            preferred_element_type=jnp.float32) + b2, 0.0)
    h = _batchnorm(h)
    return jnp.sum(h * w3, axis=-1, keepdims=True) + b3


if __name__ == "__main__":
    # Small, forward-consistent shapes.  (At production RL replay-batch sizes,
    # fold extra work — ensemble members / time steps — into B so the MXU
    # sees full rows; BN stats must remain full-batch.)
    B, STATE, ACTION = 8, 16, 4
    FC1, FC2 = 64, 32
    FC3 = FC2  # module sets fc3_units = params['CRITIC_FC2']

    key = jax.random.PRNGKey(0)
    k_state, k_action, k_params = jax.random.split(key, 3)

    state = jax.random.normal(k_state, (B, STATE), jnp.float32)
    action = jax.random.normal(k_action, (B, ACTION), jnp.float32)
    params = init_params(k_params, STATE, ACTION, FC1, FC2, FC3)

    out = critic3_forward(state, action, params)
    out = jax.block_until_ready(out)

    ref = critic3_reference(state, action, params)
    assert out.shape == (B, 1), out.shape
    assert jnp.allclose(out, ref, atol=1e-4, rtol=1e-3), (out, ref)

    print("KERNEL_OK")
</pallas_src>

<mosaic_0001>
module attributes {stable_mosaic.version = 11 : i64} {
  func.func @critic3_kernel(%arg0: memref<8x16xf32, #tpu.memory_space<vmem>>, %arg1: memref<8x4xf32, #tpu.memory_space<vmem>>, %arg2: memref<16x64xbf16, #tpu.memory_space<vmem>>, %arg3: memref<64x32xbf16, #tpu.memory_space<vmem>>, %arg4: memref<4x32xbf16, #tpu.memory_space<vmem>>, %arg5: memref<32x32xbf16, #tpu.memory_space<vmem>>, %arg6: memref<4x32xf32, #tpu.memory_space<vmem>>, %arg7: memref<8x1xf32, #tpu.memory_space<vmem>>) attributes {dimension_semantics = [], scalar_prefetch = 0 : i64, scratch_operands = 0 : i64, tpu.core_type = #tpu.core_type<tc>} {
    %c0 = arith.constant 0 : index
    %c0_0 = arith.constant 0 : index
    %0 = vector.load %arg0[%c0, %c0_0] : memref<8x16xf32, #tpu.memory_space<vmem>>, vector<8x16xf32>
    %c0_1 = arith.constant 0 : index
    %c0_2 = arith.constant 0 : index
    %1 = vector.load %arg1[%c0_1, %c0_2] : memref<8x4xf32, #tpu.memory_space<vmem>>, vector<8x4xf32>
    %2 = arith.truncf %1 : vector<8x4xf32> to vector<8x4xbf16>
    %c0_3 = arith.constant 0 : index
    %c0_4 = arith.constant 0 : index
    %3 = vector.load %arg6[%c0_3, %c0_4] : memref<4x32xf32, #tpu.memory_space<vmem>>, vector<1x32xf32>
    %c1 = arith.constant 1 : index
    %c0_5 = arith.constant 0 : index
    %4 = vector.load %arg6[%c1, %c0_5] : memref<4x32xf32, #tpu.memory_space<vmem>>, vector<1x32xf32>
    %c2 = arith.constant 2 : index
    %c0_6 = arith.constant 0 : index
    %5 = vector.load %arg6[%c2, %c0_6] : memref<4x32xf32, #tpu.memory_space<vmem>>, vector<1x32xf32>
    %c3 = arith.constant 3 : index
    %c0_7 = arith.constant 0 : index
    %6 = vector.load %arg6[%c3, %c0_7] : memref<4x32xf32, #tpu.memory_space<vmem>>, vector<1x32xf32>
    %cst = arith.constant dense<0.000000e+00> : vector<16xf32>
    %7 = vector.multi_reduction <add>, %0, %cst [0] : vector<8x16xf32> to vector<16xf32>
    %8 = vector.shape_cast %7 : vector<16xf32> to vector<1x16xf32>
    %cst_8 = arith.constant 8.000000e+00 : f32
    %9 = vector.broadcast %cst_8 : f32 to vector<1x16xf32>
    %10 = arith.divf %8, %9 : vector<1x16xf32>
    %11 = vector.broadcast %10 : vector<1x16xf32> to vector<8x16xf32>
    %12 = arith.subf %0, %11 : vector<8x16xf32>
    %13 = arith.mulf %12, %12 : vector<8x16xf32>
    %cst_9 = arith.constant dense<0.000000e+00> : vector<16xf32>
    %14 = vector.multi_reduction <add>, %13, %cst_9 [0] : vector<8x16xf32> to vector<16xf32>
    %15 = vector.shape_cast %14 : vector<16xf32> to vector<1x16xf32>
    %cst_10 = arith.constant 8.000000e+00 : f32
    %16 = vector.broadcast %cst_10 : f32 to vector<1x16xf32>
    %17 = arith.divf %15, %16 : vector<1x16xf32>
    %18 = vector.broadcast %10 : vector<1x16xf32> to vector<8x16xf32>
    %19 = arith.subf %0, %18 : vector<8x16xf32>
    %cst_11 = arith.constant 9.99999974E-6 : f32
    %20 = vector.broadcast %cst_11 : f32 to vector<1x16xf32>
    %21 = arith.addf %17, %20 : vector<1x16xf32>
    %22 = math.rsqrt %21 : vector<1x16xf32>
    %23 = vector.broadcast %22 : vector<1x16xf32> to vector<8x16xf32>
    %24 = arith.mulf %19, %23 : vector<8x16xf32>
    %25 = arith.truncf %24 : vector<8x16xf32> to vector<8x16xbf16>
    %c0_12 = arith.constant 0 : index
    %c0_13 = arith.constant 0 : index
    %26 = vector.load %arg2[%c0_12, %c0_13] : memref<16x64xbf16, #tpu.memory_space<vmem>>, vector<16x64xbf16>
    %cst_14 = arith.constant dense<0.000000e+00> : vector<8x64xf32>
    %27 = tpu.matmul %25, %26, %cst_14 {dimension_numbers = #tpu.dot_dimension_numbers<[1], [0], [0], [1], [0, 0, 1, 1], [], []>} : vector<8x16xbf16>, vector<16x64xbf16>, vector<8x64xf32> -> vector<8x64xf32>
    %cst_15 = arith.constant 0.000000e+00 : f32
    %28 = vector.broadcast %cst_15 : f32 to vector<8x64xf32>
    %29 = arith.maximumf %27, %28 : vector<8x64xf32>
    %30 = arith.truncf %29 : vector<8x64xf32> to vector<8x64xbf16>
    %c0_16 = arith.constant 0 : index
    %c0_17 = arith.constant 0 : index
    %31 = vector.load %arg3[%c0_16, %c0_17] : memref<64x32xbf16, #tpu.memory_space<vmem>>, vector<64x32xbf16>
    %cst_18 = arith.constant dense<0.000000e+00> : vector<8x32xf32>
    %32 = tpu.matmul %30, %31, %cst_18 {dimension_numbers = #tpu.dot_dimension_numbers<[1], [0], [0], [1], [0, 0, 1, 1], [], []>} : vector<8x64xbf16>, vector<64x32xbf16>, vector<8x32xf32> -> vector<8x32xf32>
    %c0_19 = arith.constant 0 : index
    %c0_20 = arith.constant 0 : index
    %33 = vector.load %arg4[%c0_19, %c0_20] : memref<4x32xbf16, #tpu.memory_space<vmem>>, vector<4x32xbf16>
    %cst_21 = arith.constant dense<0.000000e+00> : vector<8x32xf32>
    %34 = tpu.matmul %2, %33, %cst_21 {dimension_numbers = #tpu.dot_dimension_numbers<[1], [0], [0], [1], [0, 0, 1, 1], [], []>} : vector<8x4xbf16>, vector<4x32xbf16>, vector<8x32xf32> -> vector<8x32xf32>
    %35 = arith.addf %32, %34 : vector<8x32xf32>
    %36 = vector.broadcast %3 : vector<1x32xf32> to vector<8x32xf32>
    %37 = arith.addf %35, %36 : vector<8x32xf32>
    %cst_22 = arith.constant 0.000000e+00 : f32
    %38 = vector.broadcast %cst_22 : f32 to vector<8x32xf32>
    %39 = arith.maximumf %37, %38 : vector<8x32xf32>
    %cst_23 = arith.constant dense<0.000000e+00> : vector<32xf32>
    %40 = vector.multi_reduction <add>, %39, %cst_23 [0] : vector<8x32xf32> to vector<32xf32>
    %41 = vector.shape_cast %40 : vector<32xf32> to vector<1x32xf32>
    %cst_24 = arith.constant 8.000000e+00 : f32
    %42 = vector.broadcast %cst_24 : f32 to vector<1x32xf32>
    %43 = arith.divf %41, %42 : vector<1x32xf32>
    %44 = vector.broadcast %43 : vector<1x32xf32> to vector<8x32xf32>
    %45 = arith.subf %39, %44 : vector<8x32xf32>
    %46 = arith.mulf %45, %45 : vector<8x32xf32>
    %cst_25 = arith.constant dense<0.000000e+00> : vector<32xf32>
    %47 = vector.multi_reduction <add>, %46, %cst_25 [0] : vector<8x32xf32> to vector<32xf32>
    %48 = vector.shape_cast %47 : vector<32xf32> to vector<1x32xf32>
    %cst_26 = arith.constant 8.000000e+00 : f32
    %49 = vector.broadcast %cst_26 : f32 to vector<1x32xf32>
    %50 = arith.divf %48, %49 : vector<1x32xf32>
    %51 = vector.broadcast %43 : vector<1x32xf32> to vector<8x32xf32>
    %52 = arith.subf %39, %51 : vector<8x32xf32>
    %cst_27 = arith.constant 9.99999974E-6 : f32
    %53 = vector.broadcast %cst_27 : f32 to vector<1x32xf32>
    %54 = arith.addf %50, %53 : vector<1x32xf32>
    %55 = math.rsqrt %54 : vector<1x32xf32>
    %56 = vector.broadcast %55 : vector<1x32xf32> to vector<8x32xf32>
    %57 = arith.mulf %52, %56 : vector<8x32xf32>
    %58 = arith.truncf %57 : vector<8x32xf32> to vector<8x32xbf16>
    %c0_28 = arith.constant 0 : index
    %c0_29 = arith.constant 0 : index
    %59 = vector.load %arg5[%c0_28, %c0_29] : memref<32x32xbf16, #tpu.memory_space<vmem>>, vector<32x32xbf16>
    %cst_30 = arith.constant dense<0.000000e+00> : vector<8x32xf32>
    %60 = tpu.matmul %58, %59, %cst_30 {dimension_numbers = #tpu.dot_dimension_numbers<[1], [0], [0], [1], [0, 0, 1, 1], [], []>} : vector<8x32xbf16>, vector<32x32xbf16>, vector<8x32xf32> -> vector<8x32xf32>
    %61 = vector.broadcast %4 : vector<1x32xf32> to vector<8x32xf32>
    %62 = arith.addf %60, %61 : vector<8x32xf32>
    %cst_31 = arith.constant 0.000000e+00 : f32
    %63 = vector.broadcast %cst_31 : f32 to vector<8x32xf32>
    %64 = arith.maximumf %62, %63 : vector<8x32xf32>
    %cst_32 = arith.constant dense<0.000000e+00> : vector<32xf32>
    %65 = vector.multi_reduction <add>, %64, %cst_32 [0] : vector<8x32xf32> to vector<32xf32>
    %66 = vector.shape_cast %65 : vector<32xf32> to vector<1x32xf32>
    %cst_33 = arith.constant 8.000000e+00 : f32
    %67 = vector.broadcast %cst_33 : f32 to vector<1x32xf32>
    %68 = arith.divf %66, %67 : vector<1x32xf32>
    %69 = vector.broadcast %68 : vector<1x32xf32> to vector<8x32xf32>
    %70 = arith.subf %64, %69 : vector<8x32xf32>
    %71 = arith.mulf %70, %70 : vector<8x32xf32>
    %cst_34 = arith.constant dense<0.000000e+00> : vector<32xf32>
    %72 = vector.multi_reduction <add>, %71, %cst_34 [0] : vector<8x32xf32> to vector<32xf32>
    %73 = vector.shape_cast %72 : vector<32xf32> to vector<1x32xf32>
    %cst_35 = arith.constant 8.000000e+00 : f32
    %74 = vector.broadcast %cst_35 : f32 to vector<1x32xf32>
    %75 = arith.divf %73, %74 : vector<1x32xf32>
    %76 = vector.broadcast %68 : vector<1x32xf32> to vector<8x32xf32>
    %77 = arith.subf %64, %76 : vector<8x32xf32>
    %cst_36 = arith.constant 9.99999974E-6 : f32
    %78 = vector.broadcast %cst_36 : f32 to vector<1x32xf32>
    %79 = arith.addf %75, %78 : vector<1x32xf32>
    %80 = math.rsqrt %79 : vector<1x32xf32>
    %81 = vector.broadcast %80 : vector<1x32xf32> to vector<8x32xf32>
    %82 = arith.mulf %77, %81 : vector<8x32xf32>
    %83 = vector.broadcast %5 : vector<1x32xf32> to vector<8x32xf32>
    %84 = arith.mulf %82, %83 : vector<8x32xf32>
    %cst_37 = arith.constant dense<0.000000e+00> : vector<8xf32>
    %85 = vector.multi_reduction <add>, %84, %cst_37 [1] : vector<8x32xf32> to vector<8xf32>
    %86 = vector.shape_cast %85 : vector<8xf32> to vector<8x1xf32>
    %87 = vector.extract_strided_slice %6 {offsets = [0, 0], sizes = [1, 1], strides = [1, 1]} : vector<1x32xf32> to vector<1x1xf32>
    %88 = vector.broadcast %87 : vector<1x1xf32> to vector<8x1xf32>
    %89 = arith.addf %86, %88 : vector<8x1xf32>
    %c0_38 = arith.constant 0 : index
    %c0_39 = arith.constant 0 : index
    %90 = vector.load %arg7[%c0_38, %c0_39] : memref<8x1xf32, #tpu.memory_space<vmem>>, vector<8x1xf32>
    tpu.vector_store %arg7[%c0_38, %c0_39], %89 {strides = array<i32>} : memref<8x1xf32, #tpu.memory_space<vmem>>, vector<8x1xf32>,
    return
  }
}

</mosaic_0001>

<llo_original>
// kernel: critic3_forward.1
$region0: #{critic3_forward.1}
  #allocation0 [shape = 'u32[]', space=smem, size = 0x4, offset = 0x4, fixed_abs, tag = 'smem constant byte address 0x4 - core index']
  #allocation1 [shape = 'u32[144,128]{1,0:T(1,128)}', space=vmem, size = 0x12000, scoped, tag = 'internal scratch']
  %s0 = inlined_call_operand.vmem [shape: f32[8,16], index: 0, kind: input, shape index: {}]
  %s1 = inlined_call_operand.vmem [shape: f32[8,4], index: 1, kind: input, shape index: {}]
  %s2 = inlined_call_operand.vmem [shape: bf16[16,64], index: 2, kind: input, shape index: {}]
  %s3 = inlined_call_operand.vmem [shape: bf16[64,32], index: 3, kind: input, shape index: {}]
  %s4 = inlined_call_operand.vmem [shape: bf16[4,32], index: 4, kind: input, shape index: {}]
  %s5 = inlined_call_operand.vmem [shape: bf16[32,32], index: 5, kind: input, shape index: {}]
  %s6 = inlined_call_operand.vmem [shape: f32[4,32], index: 6, kind: input, shape index: {}]
  %s7 = inlined_call_operand.vmem [shape: f32[8,1], index: 7, kind: output, shape index: {}]
  %s8 = sld [smem:[#allocation0]]
  $region38: #{critic3_forward.1} parent=0
    _
  %s10 = ssub.s32 1, %s8
  %s11 = scalar_select 0, %s10, %s8
  // Predicated region
  $region2: #{critic3_forward.1} parent=0 // pred_check
    _
  $region3: #{critic3_forward.1} parent=0 // pred_check_branch
    %13 = sbr.rel (0) target = $region5
  $region4: #{critic3_forward.1} parent=0 // pred_region
    _
  $region5: #{critic3_forward.1} parent=0 // pred_fallthru
    _
  // Predicated region
  $region6: #{critic3_forward.1} parent=0 // pred_check
    _
  $region7: #{critic3_forward.1} parent=0 // pred_check_branch
    %15 = sbr.rel (0) target = $region9
  $region8: #{critic3_forward.1} parent=0 // pred_region
    _
  $region9: #{critic3_forward.1} parent=0 // pred_fallthru
    _
  // Predicated region
  $region10: #{critic3_forward.1} parent=0 // pred_check
    _
  $region11: #{critic3_forward.1} parent=0 // pred_check_branch
    %17 = sbr.rel (0) target = $region13
  $region12: #{critic3_forward.1} parent=0 // pred_region
    _
  $region13: #{critic3_forward.1} parent=0 // pred_fallthru
    _
  // Predicated region
  $region14: #{critic3_forward.1} parent=0 // pred_check
    _
  $region15: #{critic3_forward.1} parent=0 // pred_check_branch
    %19 = sbr.rel (0) target = $region17
  $region16: #{critic3_forward.1} parent=0 // pred_region
    _
  $region17: #{critic3_forward.1} parent=0 // pred_fallthru
    _
  // Predicated region
  $region18: #{critic3_forward.1} parent=0 // pred_check
    _
  $region19: #{critic3_forward.1} parent=0 // pred_check_branch
    %21 = sbr.rel (0) target = $region21
  $region20: #{critic3_forward.1} parent=0 // pred_region
    _
  $region21: #{critic3_forward.1} parent=0 // pred_fallthru
    _
  // Predicated region
  $region22: #{critic3_forward.1} parent=0 // pred_check
    _
  $region23: #{critic3_forward.1} parent=0 // pred_check_branch
    %23 = sbr.rel (0) target = $region25
  $region24: #{critic3_forward.1} parent=0 // pred_region
    _
  $region25: #{critic3_forward.1} parent=0 // pred_fallthru
    _
  // Predicated region
  $region26: #{critic3_forward.1} parent=0 // pred_check
    _
  $region27: #{critic3_forward.1} parent=0 // pred_check_branch
    %25 = sbr.rel (0) target = $region29
  $region28: #{critic3_forward.1} parent=0 // pred_region
    _
  $region29: #{critic3_forward.1} parent=0 // pred_fallthru
    _
  %v27 = vld [vmem:[%s0] sm:$0xff]
  %v28 = vld [vmem:[%s1] sm:$0xff]
  %v29 = vpack.c.bf16 %v28, %v28
  %v30 = vld [vmem:[%s6] sm:$0x1]
  %v31 = vld [vmem:[%s6 + $0x1] sm:$0x1]
  %v32 = vld [vmem:[%s6 + $0x2] sm:$0x1]
  %v33 = vld [vmem:[%s6 + $0x3] sm:$0x1]
  %vm34 = vcmask 130048
  %v35 = vsel %vm34, %v27, 0.0
  %v36 = vrot.slane %v35, 4
  %v37 = vadd.f32 %v35, %v36
  %v38 = vrot.slane %v37, 2
  %v39 = vadd.f32 %v37, %v38
  %v40 = vrot.slane %v39, 1
  %v41 = vadd.f32 %v39, %v40
  %v42 = vrcp.pop 8.0
  %v43 = vmul.f32 %v41, %v42
  %v44 = vsub.f32 %v27, %v43
  %v45 = vmul.f32 %v44, %v44
  %v46 = vsel %vm34, %v45, 0.0
  %v47 = vrot.slane %v46, 4
  %v48 = vadd.f32 %v46, %v47
  %v49 = vrot.slane %v48, 2
  %v50 = vadd.f32 %v48, %v49
  %v51 = vrot.slane %v50, 1
  %v52 = vadd.f32 %v50, %v51
  %v53 = vmul.f32 %v52, %v42
  %v54 = vadd.f32 %v53, 1e-05
  %v55 = vrsqrt.pop %v54
  %v56 = vmul.f32 %v44, %v55
  %v57 = vpack.c.bf16 %v56, %v56
  %v58 = vld [vmem:[%s2] sm:$0xf]
  %v59 = vld [vmem:[%s2 + $0x4] sm:$0xf]
  %v62 = vunpack.c.l.b16 %v58
  %v63 = vunpack.c.l.b16 %v59
  %v64 = vpack.c.b16 %v63, %v62
  %v67 = vsel %vm34, %v57, 0
  %69 = vmatprep.subr.bf16.mxu0 0
  %70 = vmatpush1.bf16.msra.mxu0 %v64
  %71 = vmatprep.subr.bf16.mxu0 0
  %72 = vmatpush1.bf16.msra.mxu0 0
  %73 = vmatprep.subr.bf16.mxu0 0
  %74 = vmatpush1.bf16.msra.mxu0 0
  %75 = vmatprep.subr.bf16.mxu0 0
  %76 = vmatpush1.bf16.msra.mxu0 0
  %77 = vmatprep.subr.bf16.mxu0 0
  %78 = vmatpush1.bf16.msra.mxu0 0
  %79 = vmatprep.subr.bf16.mxu0 0
  %80 = vmatpush1.bf16.msra.mxu0 0
  %81 = vmatprep.subr.bf16.mxu0 0
  %82 = vmatpush1.bf16.msra.mxu0 0
  %83 = vmatprep.subr.bf16.mxu0 0
  %84 = vmatpush1.bf16.msra.mxu0 0
  %85 = vmatprep.subr.bf16.mxu0 0
  %86 = vmatpush1.bf16.msra.mxu0 0
  %87 = vmatprep.subr.bf16.mxu0 0
  %88 = vmatpush1.bf16.msra.mxu0 0
  %89 = vmatprep.subr.bf16.mxu0 0
  %90 = vmatpush1.bf16.msra.mxu0 0
  %91 = vmatprep.subr.bf16.mxu0 0
  %92 = vmatpush1.bf16.msra.mxu0 0
  %93 = vmatprep.subr.bf16.mxu0 0
  %94 = vmatpush1.bf16.msra.mxu0 0
  %95 = vmatprep.subr.bf16.mxu0 0
  %96 = vmatpush1.bf16.msra.mxu0 0
  %97 = vmatprep.subr.bf16.mxu0 0
  %98 = vmatpush1.bf16.msra.mxu0 0
  %99 = vmatprep.subr.bf16.mxu0 0
  %100 = vmatpush1.bf16.msra.mxu0 0
  %101 = vmatprep.mubr.bf16.mxu0 0
  %102 = vmatmul.mubr.bf16.gmra.mrb[0].mxu0 %v67
  %v103 = vpop.f32.mrb[0].mxu0
  %v104 = vadd.f32 0.0, %v103
  %v105 = vpop.f32.mrb[0].mxu0
  %v106 = vpop.f32.mrb[0].mxu0
  %v107 = vpop.f32.mrb[0].mxu0
  %108 = vdwg.mxu0
  %v109 = vmax.f32 %v104, 0.0
  %v110 = vpack.c.bf16 %v109, %v109
  %v111 = vld [vmem:[%s3] sm:$0xf]
  %v112 = vld [vmem:[%s3 + $0x4] sm:$0xf]
  %v113 = vld [vmem:[%s3 + $0x8] sm:$0xf]
  %v114 = vld [vmem:[%s3 + $0xc] sm:$0xf]
  %v115 = vld [vmem:[%s3 + $0x10] sm:$0xf]
  %v116 = vld [vmem:[%s3 + $0x14] sm:$0xf]
  %v117 = vld [vmem:[%s3 + $0x18] sm:$0xf]
  %v118 = vld [vmem:[%s3 + $0x1c] sm:$0xf]
  %v119 = vld [vmem:[%s4] sm:$0x3]
  %vm120 = vcmask 31744
  %v122 = vsel %vm120, %v29, 0
  %vm124 = vcmask 1041408
  %v126 = vsel %vm124, %v119, 0
  %128 = vmatprep.subr.bf16.mxu0 0
  %129 = vmatpush1.bf16.msra.mxu0 %v126
  %130 = vmatprep.subr.bf16.mxu0 0
  %131 = vmatpush1.bf16.msra.mxu0 0
  %132 = vmatprep.subr.bf16.mxu0 0
  %133 = vmatpush1.bf16.msra.mxu0 0
  %134 = vmatprep.subr.bf16.mxu0 0
  %135 = vmatpush1.bf16.msra.mxu0 0
  %136 = vmatprep.subr.bf16.mxu0 0
  %137 = vmatpush1.bf16.msra.mxu0 0
  %138 = vmatprep.subr.bf16.mxu0 0
  %139 = vmatpush1.bf16.msra.mxu0 0
  %140 = vmatprep.subr.bf16.mxu0 0
  %141 = vmatpush1.bf16.msra.mxu0 0
  %142 = vmatprep.subr.bf16.mxu0 0
  %143 = vmatpush1.bf16.msra.mxu0 0
  %144 = vmatprep.subr.bf16.mxu0 0
  %145 = vmatpush1.bf16.msra.mxu0 0
  %146 = vmatprep.subr.bf16.mxu0 0
  %147 = vmatpush1.bf16.msra.mxu0 0
  %148 = vmatprep.subr.bf16.mxu0 0
  %149 = vmatpush1.bf16.msra.mxu0 0
  %150 = vmatprep.subr.bf16.mxu0 0
  %151 = vmatpush1.bf16.msra.mxu0 0
  %152 = vmatprep.subr.bf16.mxu0 0
  %153 = vmatpush1.bf16.msra.mxu0 0
  %154 = vmatprep.subr.bf16.mxu0 0
  %155 = vmatpush1.bf16.msra.mxu0 0
  %156 = vmatprep.subr.bf16.mxu0 0
  %157 = vmatpush1.bf16.msra.mxu0 0
  %158 = vmatprep.subr.bf16.mxu0 0
  %159 = vmatpush1.bf16.msra.mxu0 0
  %160 = vmatprep.mubr.bf16.mxu0 0
  %161 = vmatmul.mubr.bf16.gmra.mrb[0].mxu0 %v122
  %v162 = vpop.f32.mrb[0].mxu0
  %v163 = vadd.f32 0.0, %v162
  %v164 = vpop.f32.mrb[0].mxu0
  %v165 = vpop.f32.mrb[0].mxu0
  %v166 = vpop.f32.mrb[0].mxu0
  %167 = vdwg.mxu0
  %v176 = vunpack.c.l.b16 %v111
  %v177 = vunpack.c.l.b16 %v112
  %v178 = vunpack.c.l.b16 %v113
  %v179 = vunpack.c.l.b16 %v114
  %v180 = vunpack.c.l.b16 %v115
  %v181 = vunpack.c.l.b16 %v116
  %v182 = vunpack.c.l.b16 %v117
  %v183 = vunpack.c.l.b16 %v118
  %v184 = vpack.c.b16 %v177, %v176
  %v185 = vpack.c.b16 %v179, %v178
  %v186 = vpack.c.b16 %v181, %v180
  %v187 = vpack.c.b16 %v183, %v182
  %vm192 = vcmask 523264
  %v194 = vsel %vm192, %v110, 0
  %196 = vmatprep.subr.bf16.mxu0 0
  %197 = vmatpush1.bf16.msra.mxu0 %v184
  %198 = vmatprep.subr.bf16.mxu0 0
  %199 = vmatpush1.bf16.msra.mxu0 %v185
  %200 = vmatprep.subr.bf16.mxu0 0
  %201 = vmatpush1.bf16.msra.mxu0 %v186
  %202 = vmatprep.subr.bf16.mxu0 0
  %203 = vmatpush1.bf16.msra.mxu0 %v187
  %204 = vmatprep.subr.bf16.mxu0 0
  %205 = vmatpush1.bf16.msra.mxu0 0
  %206 = vmatprep.subr.bf16.mxu0 0
  %207 = vmatpush1.bf16.msra.mxu0 0
  %208 = vmatprep.subr.bf16.mxu0 0
  %209 = vmatpush1.bf16.msra.mxu0 0
  %210 = vmatprep.subr.bf16.mxu0 0
  %211 = vmatpush1.bf16.msra.mxu0 0
  %212 = vmatprep.subr.bf16.mxu0 0
  %213 = vmatpush1.bf16.msra.mxu0 0
  %214 = vmatprep.subr.bf16.mxu0 0
  %215 = vmatpush1.bf16.msra.mxu0 0
  %216 = vmatprep.subr.bf16.mxu0 0
  %217 = vmatpush1.bf16.msra.mxu0 0
  %218 = vmatprep.subr.bf16.mxu0 0
  %219 = vmatpush1.bf16.msra.mxu0 0
  %220 = vmatprep.subr.bf16.mxu0 0
  %221 = vmatpush1.bf16.msra.mxu0 0
  %222 = vmatprep.subr.bf16.mxu0 0
  %223 = vmatpush1.bf16.msra.mxu0 0
  %224 = vmatprep.subr.bf16.mxu0 0
  %225 = vmatpush1.bf16.msra.mxu0 0
  %226 = vmatprep.subr.bf16.mxu0 0
  %227 = vmatpush1.bf16.msra.mxu0 0
  %228 = vmatprep.mubr.bf16.mxu0 0
  %229 = vmatmul.mubr.bf16.gmra.mrb[0].mxu0 %v194
  %v230 = vpop.f32.mrb[0].mxu0
  %v231 = vadd.f32 %v163, %v230
  %v232 = vpop.f32.mrb[0].mxu0
  %v233 = vpop.f32.mrb[0].mxu0
  %v234 = vpop.f32.mrb[0].mxu0
  %235 = vdwg.mxu0
  %v236 = vlaneseq
  %v237 = vshrl.u32 %v236, 7
  %v238 = vsub.s32 0, %v237
  %v239 = vrot.slane %v30, %v238
  %v240 = vadd.f32 %v231, %v239
  %v241 = vmax.f32 %v240, 0.0
  %vm242 = vcmask 261120
  %v243 = vsel %vm242, %v241, 0.0
  %v244 = vrot.slane %v243, 4
  %v245 = vadd.f32 %v243, %v244
  %v246 = vrot.slane %v245, 2
  %v247 = vadd.f32 %v245, %v246
  %v248 = vrot.slane %v247, 1
  %v249 = vadd.f32 %v247, %v248
  %v250 = vmul.f32 %v249, %v42
  %v251 = vsub.f32 %v241, %v250
  %v252 = vmul.f32 %v251, %v251
  %v253 = vsel %vm242, %v252, 0.0
  %v254 = vrot.slane %v253, 4
  %v255 = vadd.f32 %v253, %v254
  %v256 = vrot.slane %v255, 2
  %v257 = vadd.f32 %v255, %v256
  %v258 = vrot.slane %v257, 1
  %v259 = vadd.f32 %v257, %v258
  %v260 = vmul.f32 %v259, %v42
  %v261 = vadd.f32 %v260, 1e-05
  %v262 = vrsqrt.pop %v261
  %v263 = vmul.f32 %v251, %v262
  %v264 = vpack.c.bf16 %v263, %v263
  %v265 = vld [vmem:[%s5] sm:$0xf]
  %v266 = vld [vmem:[%s5 + $0x4] sm:$0xf]
  %v267 = vld [vmem:[%s5 + $0x8] sm:$0xf]
  %v268 = vld [vmem:[%s5 + $0xc] sm:$0xf]
  %v269 = vlaneseq
  %v270 = vshrl.u32 %v269, 7
  %v271 = vsub.s32 0, %v270
  %v272 = vrot.slane %v31, %v271
  %v277 = vunpack.c.l.b16 %v265
  %v278 = vunpack.c.l.b16 %v266
  %v279 = vunpack.c.l.b16 %v267
  %v280 = vunpack.c.l.b16 %v268
  %v281 = vpack.c.b16 %v278, %v277
  %v282 = vpack.c.b16 %v280, %v279
  %v286 = vsel %vm242, %v264, 0
  %288 = vmatprep.subr.bf16.mxu0 0
  %289 = vmatpush1.bf16.msra.mxu0 %v281
  %290 = vmatprep.subr.bf16.mxu0 0
  %291 = vmatpush1.bf16.msra.mxu0 %v282
  %292 = vmatprep.subr.bf16.mxu0 0
  %293 = vmatpush1.bf16.msra.mxu0 0
  %294 = vmatprep.subr.bf16.mxu0 0
  %295 = vmatpush1.bf16.msra.mxu0 0
  %296 = vmatprep.subr.bf16.mxu0 0
  %297 = vmatpush1.bf16.msra.mxu0 0
  %298 = vmatprep.subr.bf16.mxu0 0
  %299 = vmatpush1.bf16.msra.mxu0 0
  %300 = vmatprep.subr.bf16.mxu0 0
  %301 = vmatpush1.bf16.msra.mxu0 0
  %302 = vmatprep.subr.bf16.mxu0 0
  %303 = vmatpush1.bf16.msra.mxu0 0
  %304 = vmatprep.subr.bf16.mxu0 0
  %305 = vmatpush1.bf16.msra.mxu0 0
  %306 = vmatprep.subr.bf16.mxu0 0
  %307 = vmatpush1.bf16.msra.mxu0 0
  %308 = vmatprep.subr.bf16.mxu0 0
  %309 = vmatpush1.bf16.msra.mxu0 0
  %310 = vmatprep.subr.bf16.mxu0 0
  %311 = vmatpush1.bf16.msra.mxu0 0
  %312 = vmatprep.subr.bf16.mxu0 0
  %313 = vmatpush1.bf16.msra.mxu0 0
  %314 = vmatprep.subr.bf16.mxu0 0
  %315 = vmatpush1.bf16.msra.mxu0 0
  %316 = vmatprep.subr.bf16.mxu0 0
  %317 = vmatpush1.bf16.msra.mxu0 0
  %318 = vmatprep.subr.bf16.mxu0 0
  %319 = vmatpush1.bf16.msra.mxu0 0
  %320 = vmatprep.mubr.bf16.mxu0 0
  %321 = vmatmul.mubr.bf16.gmra.mrb[0].mxu0 %v286
  %v322 = vpop.f32.mrb[0].mxu0
  %v323 = vadd.f32 %v272, %v322
  %v324 = vpop.f32.mrb[0].mxu0
  %v325 = vpop.f32.mrb[0].mxu0
  %v326 = vpop.f32.mrb[0].mxu0
  %327 = vdwg.mxu0
  %v328 = vmax.f32 %v323, 0.0
  %v329 = vsel %vm242, %v328, 0.0
  %v330 = vrot.slane %v329, 4
  %v331 = vadd.f32 %v329, %v330
  %v332 = vrot.slane %v331, 2
  %v333 = vadd.f32 %v331, %v332
  %v334 = vrot.slane %v333, 1
  %v335 = vadd.f32 %v333, %v334
  %v336 = vmul.f32 %v335, %v42
  %v337 = vsub.f32 %v328, %v336
  %v338 = vmul.f32 %v337, %v337
  %v339 = vsel %vm242, %v338, 0.0
  %v340 = vrot.slane %v339, 4
  %v341 = vadd.f32 %v339, %v340
  %v342 = vrot.slane %v341, 2
  %v343 = vadd.f32 %v341, %v342
  %v344 = vrot.slane %v343, 1
  %v345 = vadd.f32 %v343, %v344
  %v346 = vmul.f32 %v345, %v42
  %v347 = vadd.f32 %v346, 1e-05
  %v348 = vrsqrt.pop %v347
  %v349 = vmul.f32 %v337, %v348
  %v350 = vlaneseq
  %v351 = vshrl.u32 %v350, 7
  %v352 = vsub.s32 0, %v351
  %v353 = vrot.slane %v32, %v352
  %v354 = vmul.f32 %v349, %v353
  %v355 = vsel %vm242, %v354, 0.0
  %356 = vadd.xlane.f32.xlu0 %v355
  %v357 = vpop.xlane.xlu0 %356
  %v358 = vlaneseq
  %v359 = vshrl.u32 %v358, 7
  %v360 = vsub.s32 0, %v359
  %v361 = vrot.slane %v33, %v360
  %v362 = vadd.f32 %v357, %v361
  %vm363 = vcmask 7168
  %364 = vst.msk [vmem:[%s7] sm:$0xff] %vm363, %v362
  // Predicated region
  $region30: #{critic3_forward.1} parent=0 // pred_check
    _
  $region31: #{critic3_forward.1} parent=0 // pred_check_branch
    %366 = sbr.rel (0) target = $region33
  $region32: #{critic3_forward.1} parent=0 // pred_region
    _
  $region33: #{critic3_forward.1} parent=0 // pred_fallthru
    _
  // Predicated region
  $region34: #{critic3_forward.1} parent=0 // pred_check
    _
  $region35: #{critic3_forward.1} parent=0 // pred_check_branch
    %368 = sbr.rel (0) target = $region37
  $region36: #{critic3_forward.1} parent=0 // pred_region
    _
  $region37: #{critic3_forward.1} parent=0 // pred_fallthru
    _

</llo_original>
